<compile_context>
chip_gen: v6e
topology: v6e:2x2x1
jax: 0.10.0
libtpu: 0.0.40
codegen_flags: <defaults>
</compile_context>

<pallas_src>
import functools

import jax
import jax.numpy as jnp
from jax.experimental import pallas as pl
from jax.experimental.pallas import tpu as pltpu

LANE = 128     # lane width: feature dims padded to multiples of 128
SUBLANE = 8    # sublane granularity for the batch (row) dimension


def _round_up(n, m):
    return (n + m - 1) // m * m


def _cdiv(a, b):
    return (a + b - 1) // b


def _vmem_budget_bytes():
    """Generation-aware VMEM budget: ~75% of physical VMEM.

    ≈96 MiB on v5e/v6e (128 MiB physical), ≈48 MiB per-TC on v7x (64 MiB).
    """
    try:
        cap = pltpu.get_tpu_info().vmem_capacity_bytes
    except Exception:
        cap = 64 << 20  # conservative fallback = v7x per-TC physical VMEM
    return int(0.75 * cap)


def _tanh_dtype():
    """bf16 tanh on v6e/v7x (bf16-capable EUP); f32 on v5e and older chips."""
    try:
        kind = jax.devices()[0].device_kind.lower()
    except Exception:
        kind = ""
    if any(t in kind for t in ("v2", "v3", "v4", "v5")):
        return jnp.float32
    return jnp.bfloat16


# ----------------------------------------------------------------------------
# Kernels
# ----------------------------------------------------------------------------

def _fflinear_resident_kernel(x_ref, w1_ref, b1_ref, w2_ref, b2_ref, o_ref, *,
                              tanh_dtype):
    # Whole W1/W2/b1/b2 are VMEM-resident (constant index_map); one (TB, in_p)
    # x tile streams per grid step. MXU (bf16) -> VPU bias (f32) -> EUP tanh
    # -> MXU (bf16) -> VPU bias (f32).
    x = x_ref[...].astype(w1_ref.dtype)                       # bf16 for the MXU
    h = jnp.dot(x, w1_ref[...], preferred_element_type=jnp.float32) + b1_ref[...]
    h = jnp.tanh(h.astype(tanh_dtype)).astype(w2_ref.dtype)   # bf16 EUP on v6e/v7x
    y = jnp.dot(h, w2_ref[...], preferred_element_type=jnp.float32) + b2_ref[...]
    o_ref[...] = y.astype(o_ref.dtype)


def _fflinear_ktiled_kernel(x_ref, w1_ref, b1_ref, w2_ref, b2_ref, o_ref,
                            acc_ref, *, tanh_dtype):
    # Grid = (batch tiles, hidden tiles). tanh is elementwise over the hidden
    # features, so each hidden block can be activated independently; the
    # second matmul's contraction over hidden is accumulated in f32 scratch.
    h_idx = pl.program_id(1)

    @pl.when(h_idx == 0)
    def _():
        acc_ref[...] = jnp.zeros_like(acc_ref)

    x = x_ref[...].astype(w1_ref.dtype)
    h = jnp.dot(x, w1_ref[...], preferred_element_type=jnp.float32) + b1_ref[...]
    h = jnp.tanh(h.astype(tanh_dtype)).astype(w2_ref.dtype)
    acc_ref[...] += jnp.dot(h, w2_ref[...], preferred_element_type=jnp.float32)

    @pl.when(h_idx == pl.num_programs(1) - 1)
    def _():
        o_ref[...] = (acc_ref[...] + b2_ref[...]).astype(o_ref.dtype)


# ----------------------------------------------------------------------------
# Parameter prep (one-time, outside the hot path)
# ----------------------------------------------------------------------------

def prepare_fflinear_params(w1, b1, w2, b2, *, weight_dtype=jnp.bfloat16):
    """Takes PyTorch nn.Linear convention (w: [out_features, in_features]) and
    returns lane-padded, pre-transposed tensors:
      w1_t [in_p, hid_p] (weight_dtype), b1 [1, hid_p] (f32),
      w2_t [hid_p, out_p] (weight_dtype), b2 [1, out_p] (f32).
    Zero padding keeps the math exact; bf16 weights feed the MXU natively and
    halve resident VMEM / HBM traffic.  Pass weight_dtype=jnp.float32 (and use
    precision=HIGHEST in the dots) if bit-parity with an f32 reference matters.
    """
    hidden, in_f = w1.shape
    out_f = w2.shape[0]
    in_p, hid_p, out_p = (_round_up(d, LANE) for d in (in_f, hidden, out_f))

    w1_t = jnp.zeros((in_p, hid_p), weight_dtype).at[:in_f, :hidden].set(
        w1.T.astype(weight_dtype))
    b1_p = jnp.zeros((1, hid_p), jnp.float32).at[0, :hidden].set(
        b1.astype(jnp.float32))
    w2_t = jnp.zeros((hid_p, out_p), weight_dtype).at[:hidden, :out_f].set(
        w2.T.astype(weight_dtype))
    b2_p = jnp.zeros((1, out_p), jnp.float32).at[0, :out_f].set(
        b2.astype(jnp.float32))
    return w1_t, b1_p, w2_t, b2_p


# ----------------------------------------------------------------------------
# Tiling heuristics
# ----------------------------------------------------------------------------

def _pick_batch_tile(B):
    # <=512 rows per tile (well above the ~0.35us/step grid-overhead floor),
    # minimal padding waste (e.g. B=300 -> TB=152, 1.3% waste instead of 41%),
    # and >=2 tiles whenever the batch allows so the "parallel" batch axis can
    # be sharded across v7x's two TensorCores.
    max_tb = 512
    min_tiles = 2 if B >= 2 * SUBLANE else 1
    n_tiles = max(_cdiv(B, max_tb), min_tiles)
    return _round_up(_cdiv(B, n_tiles), SUBLANE)


def _pick_hidden_tile(hid_p, in_p, out_p, w_itemsize, weight_budget):
    # Largest multiple-of-LANE divisor of hid_p whose per-step W1/W2 slices
    # (double-buffered by the pipeliner) fit the weight VMEM budget.
    n_lane_blocks = hid_p // LANE
    for nt in range(1, n_lane_blocks + 1):          # nt = number of hidden tiles
        if n_lane_blocks % nt:
            continue
        th = hid_p // nt
        if 2 * w_itemsize * th * (in_p + out_p) <= weight_budget:
            return th
    return LANE


# ----------------------------------------------------------------------------
# Forward
# ----------------------------------------------------------------------------

@functools.partial(jax.jit, static_argnames=("out_size", "force_hidden_block"))
def fflinear_forward(x, w1_t, b1_p, w2_t, b2_p, *, out_size,
                     force_hidden_block=None):
    """x: [B, in_features] (unpadded). Params from prepare_fflinear_params.
    Returns [B, out_size]."""
    B, in_f = x.shape
    in_p, hid_p = w1_t.shape
    out_p = w2_t.shape[1]
    w_isz = jnp.dtype(w1_t.dtype).itemsize
    x_isz = jnp.dtype(x.dtype).itemsize

    TB = _pick_batch_tile(B)
    B_p = _round_up(B, TB)

    x_p = x
    if (B_p, in_p) != (B, in_f):
        x_p = jnp.zeros((B_p, in_p), x.dtype).at[:B, :in_f].set(x)

    budget = _vmem_budget_bytes()
    tanh_dtype = _tanh_dtype()

    # VMEM for the fully-resident scheme: bf16 W1/W2 + f32 biases (each
    # double-buffered by the default pipeliner), double-buffered x/y tiles,
    # plus f32 intermediates.
    resident_bytes = (
        2 * w_isz * (in_p * hid_p + hid_p * out_p)   # W1, W2 (x2 buffers)
        + 2 * 4 * (hid_p + out_p)                    # biases  (x2 buffers)
        + 2 * TB * (in_p + out_p) * x_isz            # x / y tiles (x2 buffers)
        + 4 * TB * (hid_p + out_p)                   # f32 hidden / y intermediates
    )
    # TODO(synk): when BlockSpec pipeline_mode=pl.Buffered(1) is supported on
    # top-level pallas_call specs, single-buffer the constant-index weight
    # specs (halves their VMEM share and raises the K-tiling threshold).
    # TODO(synk): optional fp8 weight path (per-channel scales folded into
    # prep) for v7x inference to halve weight VMEM/HBM again.

    use_ktiled = (force_hidden_block is not None) or (resident_bytes > budget)

    if not use_ktiled:
        vmem_limit = int(min(max(resident_bytes + (4 << 20), 32 << 20), budget))
        kernel = functools.partial(_fflinear_resident_kernel, tanh_dtype=tanh_dtype)
        y_p = pl.pallas_call(
            kernel,
            out_shape=jax.ShapeDtypeStruct((B_p, out_p), x.dtype),
            grid=(B_p // TB,),
            in_specs=[
                pl.BlockSpec((TB, in_p), lambda i: (i, 0)),      # x: streamed
                pl.BlockSpec((in_p, hid_p), lambda i: (0, 0)),   # W1: resident
                pl.BlockSpec((1, hid_p), lambda i: (0, 0)),      # b1: resident
                pl.BlockSpec((hid_p, out_p), lambda i: (0, 0)),  # W2: resident
                pl.BlockSpec((1, out_p), lambda i: (0, 0)),      # b2: resident
            ],
            out_specs=pl.BlockSpec((TB, out_p), lambda i: (i, 0)),
            compiler_params=pltpu.CompilerParams(
                dimension_semantics=("parallel",),
                vmem_limit_bytes=vmem_limit,
            ),
        )(x_p, w1_t, b1_p, w2_t, b2_p)
    else:
        if force_hidden_block is not None:
            TH = int(force_hidden_block)
            assert TH % LANE == 0 and hid_p % TH == 0, (TH, hid_p)
        else:
            TH = _pick_hidden_tile(hid_p, in_p, out_p, w_isz, budget // 2)
        ktiled_bytes = (
            2 * w_isz * TH * (in_p + out_p)          # W1/W2 slices (x2 buffers)
            + 2 * 4 * (TH + out_p)                   # bias slices  (x2 buffers)
            + 2 * TB * (in_p + out_p) * x_isz        # x / y tiles  (x2 buffers)
            + 4 * TB * (TH + 2 * out_p)              # f32 h tile + acc + y
        )
        vmem_limit = int(min(max(ktiled_bytes + (4 << 20), 32 << 20), budget))
        kernel = functools.partial(_fflinear_ktiled_kernel, tanh_dtype=tanh_dtype)
        y_p = pl.pallas_call(
            kernel,
            out_shape=jax.ShapeDtypeStruct((B_p, out_p), x.dtype),
            grid=(B_p // TB, hid_p // TH),
            in_specs=[
                pl.BlockSpec((TB, in_p), lambda i, h: (i, 0)),    # x (constant over h)
                pl.BlockSpec((in_p, TH), lambda i, h: (0, h)),    # W1 hidden slice
                pl.BlockSpec((1, TH), lambda i, h: (0, h)),       # b1 hidden slice
                pl.BlockSpec((TH, out_p), lambda i, h: (h, 0)),   # W2 hidden slice
                pl.BlockSpec((1, out_p), lambda i, h: (0, 0)),    # b2
            ],
            out_specs=pl.BlockSpec((TB, out_p), lambda i, h: (i, 0)),
            scratch_shapes=[pltpu.VMEM((TB, out_p), jnp.float32)],
            compiler_params=pltpu.CompilerParams(
                dimension_semantics=("parallel", "arbitrary"),
                vmem_limit_bytes=vmem_limit,
            ),
        )(x_p, w1_t, b1_p, w2_t, b2_p)

    return y_p[:B, :out_size]


# ----------------------------------------------------------------------------
# Init + demo / correctness check
# ----------------------------------------------------------------------------

def init_fflinear_params(key, input_size, hidden_size, output_size,
                         dtype=jnp.float32):
    """nn.Linear-style init (uniform +/- 1/sqrt(fan_in)), PyTorch weight
    convention (w: [out_features, in_features])."""
    k1, k2, k3, k4 = jax.random.split(key, 4)
    bound1 = 1.0 / (input_size ** 0.5)
    bound2 = 1.0 / (hidden_size ** 0.5)
    w1 = jax.random.uniform(k1, (hidden_size, input_size), dtype, -bound1, bound1)
    b1 = jax.random.uniform(k2, (hidden_size,), dtype, -bound1, bound1)
    w2 = jax.random.uniform(k3, (output_size, hidden_size), dtype, -bound2, bound2)
    b2 = jax.random.uniform(k4, (output_size,), dtype, -bound2, bound2)
    return w1, b1, w2, b2


def _reference(x, w1, b1, w2, b2):
    return jnp.tanh(x @ w1.T + b1) @ w2.T + b2


if __name__ == "__main__":
    key = jax.random.PRNGKey(0)
    k1, k2 = jax.random.split(key)

    # Tolerance rationale: weights and MXU operands are bf16 (rel err ~2^-9),
    # so we compare against the f32 reference with a bf16-appropriate bound.
    BF16_ATOL = 5e-2
    BF16_RTOL = 5e-2

    # --- Case 1: small shapes, resident-weight path -------------------------
    kx, kp = jax.random.split(k1)
    batch, input_size, hidden_size, output_size = 8, 32, 64, 16
    x = jax.random.normal(kx, (batch, input_size), dtype=jnp.float32)
    w1, b1, w2, b2 = init_fflinear_params(kp, input_size, hidden_size, output_size)
    params = prepare_fflinear_params(w1, b1, w2, b2)

    y = jax.block_until_ready(fflinear_forward(x, *params, out_size=output_size))
    ref = _reference(x, w1, b1, w2, b2)
    assert y.shape == (batch, output_size)
    assert jnp.allclose(y, ref, atol=BF16_ATOL, rtol=BF16_RTOL), \
        float(jnp.max(jnp.abs(y - ref)))

    # --- Case 2: batch tiling (>=2 tiles), feature padding, K-tiled path ----
    kx, kp = jax.random.split(k2)
    batch2, in2, hid2, out2 = 64, 96, 256, 48
    x2 = jax.random.normal(kx, (batch2, in2), dtype=jnp.float32)
    w1, b1, w2, b2 = init_fflinear_params(kp, in2, hid2, out2)
    params2 = prepare_fflinear_params(w1, b1, w2, b2)

    y_res = jax.block_until_ready(fflinear_forward(x2, *params2, out_size=out2))
    y_kt = jax.block_until_ready(
        fflinear_forward(x2, *params2, out_size=out2, force_hidden_block=128))
    ref2 = _reference(x2, w1, b1, w2, b2)
    assert y_res.shape == (batch2, out2) and y_kt.shape == (batch2, out2)
    assert jnp.allclose(y_res, ref2, atol=BF16_ATOL, rtol=BF16_RTOL)
    assert jnp.allclose(y_kt, ref2, atol=BF16_ATOL, rtol=BF16_RTOL)
    # Same bf16 inputs in both paths; only the f32 accumulation order differs.
    assert jnp.allclose(y_kt, y_res, atol=1e-4, rtol=1e-4)

    print("KERNEL_OK")
</pallas_src>

<mosaic_0001>
module attributes {stable_mosaic.version = 11 : i64} {
  func.func @_fflinear_resident_kernel(%arg0: i32, %arg1: memref<8x128xf32, #tpu.memory_space<vmem>>, %arg2: memref<128x128xbf16, #tpu.memory_space<vmem>>, %arg3: memref<1x128xf32, #tpu.memory_space<vmem>>, %arg4: memref<128x128xbf16, #tpu.memory_space<vmem>>, %arg5: memref<1x128xf32, #tpu.memory_space<vmem>>, %arg6: memref<8x128xf32, #tpu.memory_space<vmem>>) attributes {dimension_semantics = [#tpu.dimension_semantics<parallel>], iteration_bounds = array<i64: 1>, scalar_prefetch = 0 : i64, scratch_operands = 0 : i64, tpu.core_type = #tpu.core_type<tc>, window_params = [{transform_indices = @transform_0, window_bounds = array<i64: 8, 128>}, {pipeline_mode = #tpu.pipeline_mode<synchronous>, transform_indices = @transform_1, window_bounds = array<i64: 128, 128>}, {pipeline_mode = #tpu.pipeline_mode<synchronous>, transform_indices = @transform_2, window_bounds = array<i64: 1, 128>}, {pipeline_mode = #tpu.pipeline_mode<synchronous>, transform_indices = @transform_3, window_bounds = array<i64: 128, 128>}, {pipeline_mode = #tpu.pipeline_mode<synchronous>, transform_indices = @transform_4, window_bounds = array<i64: 1, 128>}, {transform_indices = @transform_5, window_bounds = array<i64: 8, 128>}]} {
    %c0 = arith.constant 0 : index
    %c0_0 = arith.constant 0 : index
    %0 = vector.load %arg1[%c0, %c0_0] : memref<8x128xf32, #tpu.memory_space<vmem>>, vector<8x128xf32>
    %1 = arith.truncf %0 : vector<8x128xf32> to vector<8x128xbf16>
    %c0_1 = arith.constant 0 : index
    %c0_2 = arith.constant 0 : index
    %2 = vector.load %arg2[%c0_1, %c0_2] : memref<128x128xbf16, #tpu.memory_space<vmem>>, vector<128x128xbf16>
    %cst = arith.constant dense<0.000000e+00> : vector<8x128xf32>
    %3 = tpu.matmul %1, %2, %cst {dimension_numbers = #tpu.dot_dimension_numbers<[1], [0], [0], [1], [0, 0, 1, 1], [], []>} : vector<8x128xbf16>, vector<128x128xbf16>, vector<8x128xf32> -> vector<8x128xf32>
    %c0_3 = arith.constant 0 : index
    %c0_4 = arith.constant 0 : index
    %4 = vector.load %arg3[%c0_3, %c0_4] : memref<1x128xf32, #tpu.memory_space<vmem>>, vector<1x128xf32>
    %5 = vector.broadcast %4 : vector<1x128xf32> to vector<8x128xf32>
    %6 = arith.addf %3, %5 : vector<8x128xf32>
    %7 = arith.truncf %6 : vector<8x128xf32> to vector<8x128xbf16>
    %8 = math.tanh %7 : vector<8x128xbf16>
    %c0_5 = arith.constant 0 : index
    %c0_6 = arith.constant 0 : index
    %9 = vector.load %arg4[%c0_5, %c0_6] : memref<128x128xbf16, #tpu.memory_space<vmem>>, vector<128x128xbf16>
    %cst_7 = arith.constant dense<0.000000e+00> : vector<8x128xf32>
    %10 = tpu.matmul %8, %9, %cst_7 {dimension_numbers = #tpu.dot_dimension_numbers<[1], [0], [0], [1], [0, 0, 1, 1], [], []>} : vector<8x128xbf16>, vector<128x128xbf16>, vector<8x128xf32> -> vector<8x128xf32>
    %c0_8 = arith.constant 0 : index
    %c0_9 = arith.constant 0 : index
    %11 = vector.load %arg5[%c0_8, %c0_9] : memref<1x128xf32, #tpu.memory_space<vmem>>, vector<1x128xf32>
    %12 = vector.broadcast %11 : vector<1x128xf32> to vector<8x128xf32>
    %13 = arith.addf %10, %12 : vector<8x128xf32>
    %c0_10 = arith.constant 0 : index
    %c0_11 = arith.constant 0 : index
    %14 = vector.load %arg6[%c0_10, %c0_11] : memref<8x128xf32, #tpu.memory_space<vmem>>, vector<8x128xf32>
    tpu.vector_store %arg6[%c0_10, %c0_11], %13 {strides = array<i32>} : memref<8x128xf32, #tpu.memory_space<vmem>>, vector<8x128xf32>,
    return
  }
  func.func @transform_0(%arg0: i32) -> (i32, i32) {
    %c0_i32 = arith.constant 0 : i32
    %c0_i32_0 = arith.constant 0 : i32
    return %arg0, %c0_i32 : i32, i32
  }
  func.func @transform_1(%arg0: i32) -> (i32, i32) {
    %c0_i32 = arith.constant 0 : i32
    %c0_i32_0 = arith.constant 0 : i32
    %c0_i32_1 = arith.constant 0 : i32
    return %c0_i32, %c0_i32_0 : i32, i32
  }
  func.func @transform_2(%arg0: i32) -> (i32, i32) {
    %c0_i32 = arith.constant 0 : i32
    %c0_i32_0 = arith.constant 0 : i32
    %c0_i32_1 = arith.constant 0 : i32
    return %c0_i32, %c0_i32_0 : i32, i32
  }
  func.func @transform_3(%arg0: i32) -> (i32, i32) {
    %c0_i32 = arith.constant 0 : i32
    %c0_i32_0 = arith.constant 0 : i32
    %c0_i32_1 = arith.constant 0 : i32
    return %c0_i32, %c0_i32_0 : i32, i32
  }
  func.func @transform_4(%arg0: i32) -> (i32, i32) {
    %c0_i32 = arith.constant 0 : i32
    %c0_i32_0 = arith.constant 0 : i32
    %c0_i32_1 = arith.constant 0 : i32
    return %c0_i32, %c0_i32_0 : i32, i32
  }
  func.func @transform_5(%arg0: i32) -> (i32, i32) {
    %c0_i32 = arith.constant 0 : i32
    %c0_i32_0 = arith.constant 0 : i32
    return %arg0, %c0_i32 : i32, i32
  }
}

</mosaic_0001>

<llo_original>
// kernel: fflinear_forward.1
$region0: #{fflinear_forward.1}
  #allocation0 [shape = 'u32[]', space=smem, size = 0x4, offset = 0x4, fixed_abs, tag = 'smem constant byte address 0x4 - core index']
  #allocation1 [shape = 'u32[144,128]{1,0:T(1,128)}', space=vmem, size = 0x12000, scoped, tag = 'internal scratch']
  %s0 = inlined_call_operand.vmem [shape: f32[8,128], index: 0, kind: input, shape index: {}]
  %s1 = inlined_call_operand.hbm [shape: bf16[128,128], index: 1, kind: input, shape index: {}]
  %s2 = inlined_call_operand.vmem [shape: f32[1,128], index: 2, kind: input, shape index: {}]
  %s3 = inlined_call_operand.hbm [shape: bf16[128,128], index: 3, kind: input, shape index: {}]
  %s4 = inlined_call_operand.vmem [shape: f32[1,128], index: 4, kind: input, shape index: {}]
  %s5 = inlined_call_operand.hbm [shape: f32[8,128], index: 5, kind: output, shape index: {}]
  %s6 = sld [smem:[#allocation0]]
  $region38: #{fflinear_forward.1} parent=0
    _
  %s8 = ssub.s32 1, %s6
  %s9 = scalar_select 0, %s8, %s6
  $region1: #{fflinear_forward.1} parent=0
    #allocation2 [shape = 'u8[32768]{0}', space=vmem, size = 0x8000, scoped, tag = 'input window, operand 1, single buffered']
    #allocation3 [shape = 's32[1]{0}', space=sflag, size = 0x4, scoped, tag = 'scoped memory for fflinear_forward.1']
    #allocation4 [shape = 's32[1]{0}', space=sflag, size = 0x4, scoped, tag = 'scoped memory for fflinear_forward.1']
    #allocation5 [shape = 'u8[32768]{0}', space=vmem, size = 0x8000, scoped, tag = 'input window, operand 3, single buffered']
    #allocation6 [shape = 's32[1]{0}', space=sflag, size = 0x4, scoped, tag = 'scoped memory for fflinear_forward.1']
    #allocation7 [shape = 'u8[4096]{0}', space=vmem, size = 0x1000, scoped, tag = 'output window, operand 0, single buffered']
    %10 = vsyncpa [#allocation3], 0
    %11 = vsyncpa [#allocation6], 0
    %12 = vsyncpa [#allocation4], 0
    // Predicated region
    $region2: #{fflinear_forward.1} parent=1 // pred_check
      _
    $region3: #{fflinear_forward.1} parent=1 // pred_check_branch
      %14 = sbr.rel (0) target = $region5
    $region4: #{fflinear_forward.1} parent=1 // pred_region
      _
    $region5: #{fflinear_forward.1} parent=1 // pred_fallthru
      _
    // Predicated region
    $region6: #{fflinear_forward.1} parent=1 // pred_check
      _
    $region7: #{fflinear_forward.1} parent=1 // pred_check_branch
      %16 = sbr.rel (0) target = $region9
    $region8: #{fflinear_forward.1} parent=1 // pred_region
      %s18 = ssub.s32 1024, 1024
      %19 = vsyncadd [#allocation3], %s18
      %s20 = sshll.u32 [#allocation2], 4
      %s21 = int_to_ptr.vmem [resolvable:$true] %s20
      %26 = dma.hbm_to_vmem [thread:$0]  %s1, 1024, %s21, [#allocation3], 64, 64, 4
    $region9: #{fflinear_forward.1} parent=1 // pred_fallthru
      _
    // Predicated region
    $region10: #{fflinear_forward.1} parent=1 // pred_check
      _
    $region11: #{fflinear_forward.1} parent=1 // pred_check_branch
      %28 = sbr.rel (0) target = $region13
    $region12: #{fflinear_forward.1} parent=1 // pred_region
      _
    $region13: #{fflinear_forward.1} parent=1 // pred_fallthru
      _
    // Predicated region
    $region14: #{fflinear_forward.1} parent=1 // pred_check
      _
    $region15: #{fflinear_forward.1} parent=1 // pred_check_branch
      %30 = sbr.rel (0) target = $region17
    $region16: #{fflinear_forward.1} parent=1 // pred_region
      %s32 = ssub.s32 1024, 1024
      %33 = vsyncadd [#allocation6], %s32
      %s34 = sshll.u32 [#allocation5], 4
      %s35 = int_to_ptr.vmem [resolvable:$true] %s34
      %40 = dma.hbm_to_vmem [thread:$0]  %s3, 1024, %s35, [#allocation6], 64, 64, 4
    $region17: #{fflinear_forward.1} parent=1 // pred_fallthru
      _
    // Predicated region
    $region18: #{fflinear_forward.1} parent=1 // pred_check
      _
    $region19: #{fflinear_forward.1} parent=1 // pred_check_branch
      %42 = sbr.rel (0) target = $region21
    $region20: #{fflinear_forward.1} parent=1 // pred_region
      _
    $region21: #{fflinear_forward.1} parent=1 // pred_fallthru
      _
    // Predicated region
    $region22: #{fflinear_forward.1} parent=1 // pred_check
      _
    $region23: #{fflinear_forward.1} parent=1 // pred_check_branch
      %44 = sbr.rel (0) target = $region25
    $region24: #{fflinear_forward.1} parent=1 // pred_region
      %45 = dma.done [#allocation3], 1024
    $region25: #{fflinear_forward.1} parent=1 // pred_fallthru
      _
    // Predicated region
    $region26: #{fflinear_forward.1} parent=1 // pred_check
      _
    $region27: #{fflinear_forward.1} parent=1 // pred_check_branch
      %47 = sbr.rel (0) target = $region29
    $region28: #{fflinear_forward.1} parent=1 // pred_region
      %48 = dma.done [#allocation6], 1024
    $region29: #{fflinear_forward.1} parent=1 // pred_fallthru
      _
    %v50 = vld [vmem:[%s0] sm:$0xff]
    %v51 = vpack.c.bf16 %v50, %v50
    %v52 = vld [vmem:[#allocation2] sm:$0xf]
    %v53 = vld [vmem:[#allocation2 + $0x4] sm:$0xf]
    %v54 = vld [vmem:[#allocation2 + $0x8] sm:$0xf]
    %v55 = vld [vmem:[#allocation2 + $0xc] sm:$0xf]
    %v56 = vld [vmem:[#allocation2 + $0x10] sm:$0xf]
    %v57 = vld [vmem:[#allocation2 + $0x14] sm:$0xf]
    %v58 = vld [vmem:[#allocation2 + $0x18] sm:$0xf]
    %v59 = vld [vmem:[#allocation2 + $0x1c] sm:$0xf]
    %v60 = vld [vmem:[#allocation2 + $0x20] sm:$0xf]
    %v61 = vld [vmem:[#allocation2 + $0x24] sm:$0xf]
    %v62 = vld [vmem:[#allocation2 + $0x28] sm:$0xf]
    %v63 = vld [vmem:[#allocation2 + $0x2c] sm:$0xf]
    %v64 = vld [vmem:[#allocation2 + $0x30] sm:$0xf]
    %v65 = vld [vmem:[#allocation2 + $0x34] sm:$0xf]
    %v66 = vld [vmem:[#allocation2 + $0x38] sm:$0xf]
    %v67 = vld [vmem:[#allocation2 + $0x3c] sm:$0xf]
    %v68 = vld [vmem:[%s2] sm:$0x1]
    %v70 = vlaneseq
    %v71 = vshrl.u32 %v70, 7
    %v72 = vsub.s32 0, %v71
    %v73 = vrot.slane %v68, %v72
    %v91 = vunpack.c.l.b16 %v52
    %v92 = vunpack.c.l.b16 %v53
    %v93 = vunpack.c.l.b16 %v54
    %v94 = vunpack.c.l.b16 %v55
    %v95 = vunpack.c.l.b16 %v56
    %v96 = vunpack.c.l.b16 %v57
    %v97 = vunpack.c.l.b16 %v58
    %v98 = vunpack.c.l.b16 %v59
    %v99 = vunpack.c.l.b16 %v60
    %v100 = vunpack.c.l.b16 %v61
    %v101 = vunpack.c.l.b16 %v62
    %v102 = vunpack.c.l.b16 %v63
    %v103 = vunpack.c.l.b16 %v64
    %v104 = vunpack.c.l.b16 %v65
    %v105 = vunpack.c.l.b16 %v66
    %v106 = vunpack.c.l.b16 %v67
    %v107 = vpack.c.b16 %v92, %v91
    %v108 = vpack.c.b16 %v94, %v93
    %v109 = vpack.c.b16 %v96, %v95
    %v110 = vpack.c.b16 %v98, %v97
    %v111 = vpack.c.b16 %v100, %v99
    %v112 = vpack.c.b16 %v102, %v101
    %v113 = vpack.c.b16 %v104, %v103
    %v114 = vpack.c.b16 %v106, %v105
    %123 = vmatprep.subr.bf16.mxu0 0
    %124 = vmatpush1.bf16.msra.mxu0 %v114
    %125 = vmatprep.subr.bf16.mxu0 0
    %126 = vmatpush1.bf16.msra.mxu0 %v113
    %127 = vmatprep.subr.bf16.mxu0 0
    %128 = vmatpush1.bf16.msra.mxu0 %v112
    %129 = vmatprep.subr.bf16.mxu0 0
    %130 = vmatpush1.bf16.msra.mxu0 %v111
    %131 = vmatprep.subr.bf16.mxu0 0
    %132 = vmatpush1.bf16.msra.mxu0 %v110
    %133 = vmatprep.subr.bf16.mxu0 0
    %134 = vmatpush1.bf16.msra.mxu0 %v109
    %135 = vmatprep.subr.bf16.mxu0 0
    %136 = vmatpush1.bf16.msra.mxu0 %v108
    %137 = vmatprep.subr.bf16.mxu0 0
    %138 = vmatpush1.bf16.msra.mxu0 %v107
    %139 = vmatprep.subr.bf16.mxu0 0
    %140 = vmatpush2.bf16.msra.mxu0 0
    %141 = vmatprep.subr.bf16.mxu0 0
    %142 = vmatpush2.bf16.msra.mxu0 0
    %143 = vmatprep.subr.bf16.mxu0 0
    %144 = vmatpush2.bf16.msra.mxu0 0
    %145 = vmatprep.subr.bf16.mxu0 0
    %146 = vmatpush2.bf16.msra.mxu0 0
    %147 = vmatprep.subr.bf16.mxu0 0
    %148 = vmatpush2.bf16.msra.mxu0 0
    %149 = vmatprep.subr.bf16.mxu0 0
    %150 = vmatpush2.bf16.msra.mxu0 0
    %151 = vmatprep.subr.bf16.mxu0 0
    %152 = vmatpush2.bf16.msra.mxu0 0
    %153 = vmatprep.subr.bf16.mxu0 0
    %154 = vmatpush2.bf16.msra.mxu0 0
    %155 = vmatprep.mubr.bf16.mxu0 0
    %156 = vmatmul.mubr.bf16.gmra.mxu0 %v51
    %v157 = vpop.f32.mrf.mxu0
    %v158 = vadd.f32 %v73, %v157
    %v159 = vpop.f32.mrf.mxu0
    %v160 = vpop.f32.mrf.mxu0
    %v161 = vpop.f32.mrf.mxu0
    %162 = vdwg.mxu0
    %v163 = vpack.c.bf16 %v158, %v158
    %v164 = vtanh.bf16.pop %v163
    %v165 = vld [vmem:[#allocation5] sm:$0xf]
    %v166 = vld [vmem:[#allocation5 + $0x4] sm:$0xf]
    %v167 = vld [vmem:[#allocation5 + $0x8] sm:$0xf]
    %v168 = vld [vmem:[#allocation5 + $0xc] sm:$0xf]
    %v169 = vld [vmem:[#allocation5 + $0x10] sm:$0xf]
    %v170 = vld [vmem:[#allocation5 + $0x14] sm:$0xf]
    %v171 = vld [vmem:[#allocation5 + $0x18] sm:$0xf]
    %v172 = vld [vmem:[#allocation5 + $0x1c] sm:$0xf]
    %v173 = vld [vmem:[#allocation5 + $0x20] sm:$0xf]
    %v174 = vld [vmem:[#allocation5 + $0x24] sm:$0xf]
    %v175 = vld [vmem:[#allocation5 + $0x28] sm:$0xf]
    %v176 = vld [vmem:[#allocation5 + $0x2c] sm:$0xf]
    %v177 = vld [vmem:[#allocation5 + $0x30] sm:$0xf]
    %v178 = vld [vmem:[#allocation5 + $0x34] sm:$0xf]
    %v179 = vld [vmem:[#allocation5 + $0x38] sm:$0xf]
    %v180 = vld [vmem:[#allocation5 + $0x3c] sm:$0xf]
    %v181 = vld [vmem:[%s4] sm:$0x1]
    %v183 = vlaneseq
    %v184 = vshrl.u32 %v183, 7
    %v185 = vsub.s32 0, %v184
    %v186 = vrot.slane %v181, %v185
    %v204 = vunpack.c.l.b16 %v165
    %v205 = vunpack.c.l.b16 %v166
    %v206 = vunpack.c.l.b16 %v167
    %v207 = vunpack.c.l.b16 %v168
    %v208 = vunpack.c.l.b16 %v169
    %v209 = vunpack.c.l.b16 %v170
    %v210 = vunpack.c.l.b16 %v171
    %v211 = vunpack.c.l.b16 %v172
    %v212 = vunpack.c.l.b16 %v173
    %v213 = vunpack.c.l.b16 %v174
    %v214 = vunpack.c.l.b16 %v175
    %v215 = vunpack.c.l.b16 %v176
    %v216 = vunpack.c.l.b16 %v177
    %v217 = vunpack.c.l.b16 %v178
    %v218 = vunpack.c.l.b16 %v179
    %v219 = vunpack.c.l.b16 %v180
    %v220 = vpack.c.b16 %v205, %v204
    %v221 = vpack.c.b16 %v207, %v206
    %v222 = vpack.c.b16 %v209, %v208
    %v223 = vpack.c.b16 %v211, %v210
    %v224 = vpack.c.b16 %v213, %v212
    %v225 = vpack.c.b16 %v215, %v214
    %v226 = vpack.c.b16 %v217, %v216
    %v227 = vpack.c.b16 %v219, %v218
    %236 = vmatprep.subr.bf16.mxu0 0
    %237 = vmatpush1.bf16.msra.mxu0 %v227
    %238 = vmatprep.subr.bf16.mxu0 0
    %239 = vmatpush1.bf16.msra.mxu0 %v226
    %240 = vmatprep.subr.bf16.mxu0 0
    %241 = vmatpush1.bf16.msra.mxu0 %v225
    %242 = vmatprep.subr.bf16.mxu0 0
    %243 = vmatpush1.bf16.msra.mxu0 %v224
    %244 = vmatprep.subr.bf16.mxu0 0
    %245 = vmatpush1.bf16.msra.mxu0 %v223
    %246 = vmatprep.subr.bf16.mxu0 0
    %247 = vmatpush1.bf16.msra.mxu0 %v222
    %248 = vmatprep.subr.bf16.mxu0 0
    %249 = vmatpush1.bf16.msra.mxu0 %v221
    %250 = vmatprep.subr.bf16.mxu0 0
    %251 = vmatpush1.bf16.msra.mxu0 %v220
    %252 = vmatprep.subr.bf16.mxu0 0
    %253 = vmatpush2.bf16.msra.mxu0 0
    %254 = vmatprep.subr.bf16.mxu0 0
    %255 = vmatpush2.bf16.msra.mxu0 0
    %256 = vmatprep.subr.bf16.mxu0 0
    %257 = vmatpush2.bf16.msra.mxu0 0
    %258 = vmatprep.subr.bf16.mxu0 0
    %259 = vmatpush2.bf16.msra.mxu0 0
    %260 = vmatprep.subr.bf16.mxu0 0
    %261 = vmatpush2.bf16.msra.mxu0 0
    %262 = vmatprep.subr.bf16.mxu0 0
    %263 = vmatpush2.bf16.msra.mxu0 0
    %264 = vmatprep.subr.bf16.mxu0 0
    %265 = vmatpush2.bf16.msra.mxu0 0
    %266 = vmatprep.subr.bf16.mxu0 0
    %267 = vmatpush2.bf16.msra.mxu0 0
    %268 = vmatprep.mubr.bf16.mxu0 0
    %269 = vmatmul.mubr.bf16.gmra.mxu0 %v164
    %v270 = vpop.f32.mrf.mxu0
    %v271 = vadd.f32 %v186, %v270
    %v272 = vpop.f32.mrf.mxu0
    %v273 = vpop.f32.mrf.mxu0
    %v274 = vpop.f32.mrf.mxu0
    %275 = vdwg.mxu0
    %276 = vst [vmem:[#allocation7] sm:$0xff] %v271
    // Predicated region
    $region30: #{fflinear_forward.1} parent=1 // pred_check
      _
    $region31: #{fflinear_forward.1} parent=1 // pred_check_branch
      %278 = sbr.rel (0) target = $region33
    $region32: #{fflinear_forward.1} parent=1 // pred_region
      %s280 = ssub.s32 128, 128
      %281 = vsyncadd [#allocation4], %s280
      %s283 = sshll.u32 [#allocation7], 4
      %s284 = int_to_ptr.vmem [resolvable:$true] %s283
      %286 = dma.vmem_to_hbm [thread:$0]  %s284, 128, %s5, [#allocation4]
    $region33: #{fflinear_forward.1} parent=1 // pred_fallthru
      _
    // Predicated region
    $region34: #{fflinear_forward.1} parent=1 // pred_check
      _
    $region35: #{fflinear_forward.1} parent=1 // pred_check_branch
      %288 = sbr.rel (0) target = $region37
    $region36: #{fflinear_forward.1} parent=1 // pred_region
      %289 = dma.done [#allocation4], 128
    $region37: #{fflinear_forward.1} parent=1 // pred_fallthru
      _
    %290 = vsyncpa [#allocation3], 1
    %291 = vsyncpa [#allocation6], 1
    %292 = vsyncpa [#allocation4], 1

</llo_original>
